<compile_context>
chip_gen: v7x
topology: tpu7x:2x2x1
jax: 0.10.0
libtpu: 0.0.40
codegen_flags: <defaults>
</compile_context>

<pallas_src>
import jax
import jax.numpy as jnp
from jax.experimental import pallas as pl
from jax.experimental.pallas import tpu as pltpu


def _model_kernel(x_ref, w1_ref, b1_ref, w2t_ref, b2_ref, out_ref):
    # Per-batch tile: x_ref block is (1, S, D); weights are full residents.
    x = x_ref[0]                       # (S, D)  fp32
    w1 = w1_ref[...]                   # (O1, S)
    b1 = b1_ref[...]                   # (O1, 1)

    # First linear with the (0,2,1) permute fused into the layout:
    # v2t[o1, d] = sum_s W1[o1, s] * x[s, d] + b1[o1]   (== PyTorch v2[b, d, o1])
    # Single 2-D MXU pass, K = S on the minor axis of W1 / sublane axis of x.
    v2t = jnp.dot(w1, x, preferred_element_type=jnp.float32) + b1   # (O1, D)

    # torch.max(v2, dim=-1)[1]: argmax over O1, which is axis 0 in this layout
    # (sublane reductions only; first-max tie-break like jnp.argmax).
    o1 = v2t.shape[0]
    m = jnp.max(v2t, axis=0, keepdims=True)                          # (1, D)
    iota = jax.lax.broadcasted_iota(jnp.int32, v2t.shape, 0)
    idx = jnp.min(jnp.where(v2t == m, iota, o1), axis=0, keepdims=True)  # (1, D)

    v3t = v2t + idx.astype(v2t.dtype)                                # (O1, D)

    # Second linear with the second permute fused: (O1, D) @ (D, O2),
    # K = D on the minor axis of v3t (no transpose of the intermediate).
    # relu on the tiny weight tile is recomputed per grid step on purpose: it is
    # one VPU max over <1 vreg and keeps megacore ("parallel") semantics safe
    # (a pid==0-initialized scratch would not be visible to the second core).
    w2r = jnp.maximum(w2t_ref[...], 0.0)                             # (D, O2)
    b2r = jnp.maximum(b2_ref[...], 0.0)                              # (1, O2)
    v4 = jnp.dot(v3t, w2r, preferred_element_type=jnp.float32) + b2r # (O1, O2)
    v4 = jnp.clip(v4, -1.0, 1.0)                                     # hardtanh

    # Staged reduction: lanes (O2) first, then sublanes (O1) -> per-batch scalar.
    partial = jnp.sum(jnp.sum(v4, axis=1, keepdims=True), axis=0, keepdims=True)  # (1,1)

    # Lane-dense, unmasked (8,128) store of the partial sum for this batch.
    out_ref[...] = jnp.broadcast_to(partial.reshape(1, 1, 1), out_ref.shape)


def model_forward(x1, x2, w1, b1, w2, b2):
    # x2 is unused by the original forward; kept in the signature for parity.
    del x2
    B, S, D = x1.shape
    O1 = w1.shape[0]
    O2 = w2.shape[0]

    # Layout plumbing only (no compute hoisting): bias as a sublane vector,
    # W2 transposed so the kernel's second matmul is a canonical (M,K)@(K,N).
    b1_2d = b1.reshape(O1, 1)
    w2t = jnp.transpose(w2)            # (D, O2)
    b2_2d = b2.reshape(1, O2)

    flops = 2 * B * O1 * S * D + 2 * B * O1 * D * O2
    bytes_accessed = 4 * (x1.size + w1.size + b1.size + w2.size + b2.size + B * 8 * 128)

    partials = pl.pallas_call(
        _model_kernel,
        out_shape=jax.ShapeDtypeStruct((B, 8, 128), jnp.float32),
        grid=(B,),
        in_specs=[
            pl.BlockSpec((1, S, D), lambda b: (b, 0, 0)),   # x1: one batch per step
            pl.BlockSpec((O1, S), lambda b: (0, 0)),        # W1: VMEM resident
            pl.BlockSpec((O1, 1), lambda b: (0, 0)),        # b1
            pl.BlockSpec((D, O2), lambda b: (0, 0)),        # relu-input W2^T
            pl.BlockSpec((1, O2), lambda b: (0, 0)),        # b2
        ],
        out_specs=pl.BlockSpec((1, 8, 128), lambda b: (b, 0, 0)),
        compiler_params=pltpu.CompilerParams(
            dimension_semantics=("parallel",),              # megacore split on v7x
        ),
        cost_estimate=pl.CostEstimate(
            flops=flops, transcendentals=0, bytes_accessed=bytes_accessed),
    )(x1, w1, b1_2d, w2t, b2_2d)

    # Final cross-batch reduction of the per-block partial sums in JAX.
    return jnp.sum(partials[:, 0, 0])


def _reference(x1, w1, b1, w2, b2):
    v1 = jnp.transpose(x1, (0, 2, 1))
    v2 = v1 @ w1.T + b1
    idx = jnp.argmax(v2, axis=-1)[..., None].astype(v2.dtype)
    v3 = v2 + idx
    v3 = jnp.transpose(v3, (0, 2, 1))
    w2r = jnp.maximum(w2, 0.0)
    b2r = jnp.maximum(b2, 0.0)
    v4 = v3 @ w2r.T + b2r
    return jnp.sum(jnp.clip(v4, -1.0, 1.0))


if __name__ == "__main__":
    # Small shapes consistent with the forward: x1 (B, S, D); linear: S -> O1,
    # linear2: D -> O2.
    B, S, D, O1, O2 = 2, 8, 16, 32, 24

    key = jax.random.PRNGKey(0)
    k1, k2, k3, k4, k5, k6 = jax.random.split(key, 6)
    x1 = jax.random.normal(k1, (B, S, D), dtype=jnp.float32)
    x2 = jax.random.normal(k2, (B, S, D), dtype=jnp.float32)  # unused
    w1 = jax.random.normal(k3, (O1, S), dtype=jnp.float32) * 0.1
    b1 = jax.random.normal(k4, (O1,), dtype=jnp.float32) * 0.1
    w2 = jax.random.normal(k5, (O2, D), dtype=jnp.float32) * 0.1
    b2 = jax.random.normal(k6, (O2,), dtype=jnp.float32) * 0.1

    out = model_forward(x1, x2, w1, b1, w2, b2)
    jax.block_until_ready(out)

    ref = _reference(x1, w1, b1, w2, b2)
    assert jnp.allclose(out, ref, rtol=1e-4, atol=1e-4), (out, ref)

    print("KERNEL_OK")
</pallas_src>

<mosaic_0001>
module attributes {stable_mosaic.version = 11 : i64} {
  func.func @_model_kernel(%arg0: i32, %arg1: memref<1x8x16xf32, #tpu.memory_space<vmem>>, %arg2: memref<32x8xf32, #tpu.memory_space<vmem>>, %arg3: memref<32x1xf32, #tpu.memory_space<vmem>>, %arg4: memref<16x24xf32, #tpu.memory_space<vmem>>, %arg5: memref<1x24xf32, #tpu.memory_space<vmem>>, %arg6: memref<1x8x128xf32, #tpu.memory_space<vmem>>) attributes {dimension_semantics = [#tpu.dimension_semantics<parallel>], iteration_bounds = array<i64: 2>, scalar_prefetch = 0 : i64, scratch_operands = 0 : i64, tpu.core_type = #tpu.core_type<tc>, window_params = [{transform_indices = @transform_0, window_bounds = array<i64: 1, 8, 16>}, {pipeline_mode = #tpu.pipeline_mode<synchronous>, transform_indices = @transform_1, window_bounds = array<i64: 32, 8>}, {pipeline_mode = #tpu.pipeline_mode<synchronous>, transform_indices = @transform_2, window_bounds = array<i64: 32, 1>}, {pipeline_mode = #tpu.pipeline_mode<synchronous>, transform_indices = @transform_3, window_bounds = array<i64: 16, 24>}, {pipeline_mode = #tpu.pipeline_mode<synchronous>, transform_indices = @transform_4, window_bounds = array<i64: 1, 24>}, {transform_indices = @transform_5, window_bounds = array<i64: 1, 8, 128>}]} {
    %c0 = arith.constant 0 : index
    %c0_0 = arith.constant 0 : index
    %c0_1 = arith.constant 0 : index
    %0 = vector.load %arg1[%c0, %c0_0, %c0_1] : memref<1x8x16xf32, #tpu.memory_space<vmem>>, vector<1x8x16xf32>
    %1 = vector.shape_cast %0 : vector<1x8x16xf32> to vector<8x16xf32>
    %c0_2 = arith.constant 0 : index
    %c0_3 = arith.constant 0 : index
    %2 = vector.load %arg2[%c0_2, %c0_3] : memref<32x8xf32, #tpu.memory_space<vmem>>, vector<32x8xf32>
    %c0_4 = arith.constant 0 : index
    %c0_5 = arith.constant 0 : index
    %3 = vector.load %arg3[%c0_4, %c0_5] : memref<32x1xf32, #tpu.memory_space<vmem>>, vector<32x1xf32>
    %cst = arith.constant dense<0.000000e+00> : vector<32x16xf32>
    %4 = tpu.matmul %2, %1, %cst {dimension_numbers = #tpu.dot_dimension_numbers<[1], [0], [0], [1], [0, 0, 1, 1], [], []>} : vector<32x8xf32>, vector<8x16xf32>, vector<32x16xf32> -> vector<32x16xf32>
    %5 = vector.broadcast %3 : vector<32x1xf32> to vector<32x16xf32>
    %6 = arith.addf %4, %5 : vector<32x16xf32>
    %cst_6 = arith.constant dense<0xFF800000> : vector<16xf32>
    %7 = vector.multi_reduction <maximumf>, %6, %cst_6 [0] : vector<32x16xf32> to vector<16xf32>
    %8 = vector.shape_cast %7 : vector<16xf32> to vector<1x16xf32>
    %9 = tpu.iota {dimensions = array<i32: 0>} : vector<32x16xi32>
    %10 = vector.broadcast %8 : vector<1x16xf32> to vector<32x16xf32>
    %11 = arith.cmpf oeq, %6, %10 : vector<32x16xf32>
    %c32_i32 = arith.constant 32 : i32
    %12 = vector.broadcast %c32_i32 : i32 to vector<32x16xi32>
    %13 = arith.select %11, %9, %12 : vector<32x16xi1>, vector<32x16xi32>
    %cst_7 = arith.constant dense<2147483647> : vector<16xi32>
    %14 = vector.multi_reduction <minsi>, %13, %cst_7 [0] : vector<32x16xi32> to vector<16xi32>
    %15 = vector.shape_cast %14 : vector<16xi32> to vector<1x16xi32>
    %16 = arith.sitofp %15 : vector<1x16xi32> to vector<1x16xf32>
    %17 = vector.broadcast %16 : vector<1x16xf32> to vector<32x16xf32>
    %18 = arith.addf %6, %17 : vector<32x16xf32>
    %c0_8 = arith.constant 0 : index
    %c0_9 = arith.constant 0 : index
    %19 = vector.load %arg4[%c0_8, %c0_9] : memref<16x24xf32, #tpu.memory_space<vmem>>, vector<16x24xf32>
    %cst_10 = arith.constant 0.000000e+00 : f32
    %20 = vector.broadcast %cst_10 : f32 to vector<16x24xf32>
    %21 = arith.maximumf %19, %20 : vector<16x24xf32>
    %c0_11 = arith.constant 0 : index
    %c0_12 = arith.constant 0 : index
    %22 = vector.load %arg5[%c0_11, %c0_12] : memref<1x24xf32, #tpu.memory_space<vmem>>, vector<1x24xf32>
    %cst_13 = arith.constant 0.000000e+00 : f32
    %23 = vector.broadcast %cst_13 : f32 to vector<1x24xf32>
    %24 = arith.maximumf %22, %23 : vector<1x24xf32>
    %cst_14 = arith.constant dense<0.000000e+00> : vector<32x24xf32>
    %25 = tpu.matmul %18, %21, %cst_14 {dimension_numbers = #tpu.dot_dimension_numbers<[1], [0], [0], [1], [0, 0, 1, 1], [], []>} : vector<32x16xf32>, vector<16x24xf32>, vector<32x24xf32> -> vector<32x24xf32>
    %26 = vector.broadcast %24 : vector<1x24xf32> to vector<32x24xf32>
    %27 = arith.addf %25, %26 : vector<32x24xf32>
    %cst_15 = arith.constant -1.000000e+00 : f32
    %cst_16 = arith.constant 1.000000e+00 : f32
    %28 = vector.broadcast %cst_15 : f32 to vector<32x24xf32>
    %29 = arith.maximumf %28, %27 : vector<32x24xf32>
    %30 = vector.broadcast %cst_16 : f32 to vector<32x24xf32>
    %31 = arith.minimumf %30, %29 : vector<32x24xf32>
    %cst_17 = arith.constant dense<0.000000e+00> : vector<32xf32>
    %32 = vector.multi_reduction <add>, %31, %cst_17 [1] : vector<32x24xf32> to vector<32xf32>
    %33 = vector.shape_cast %32 : vector<32xf32> to vector<32x1xf32>
    %cst_18 = arith.constant dense<0.000000e+00> : vector<1xf32>
    %34 = vector.multi_reduction <add>, %33, %cst_18 [0] : vector<32x1xf32> to vector<1xf32>
    %35 = vector.shape_cast %34 : vector<1xf32> to vector<1x1xf32>
    %36 = vector.shape_cast %35 : vector<1x1xf32> to vector<1x1x1xf32>
    %37 = vector.shape_cast %36 : vector<1x1x1xf32> to vector<1x1x1xf32>
    %38 = vector.broadcast %37 : vector<1x1x1xf32> to vector<1x8x128xf32>
    %c0_19 = arith.constant 0 : index
    %c0_20 = arith.constant 0 : index
    %c0_21 = arith.constant 0 : index
    %39 = vector.load %arg6[%c0_19, %c0_20, %c0_21] : memref<1x8x128xf32, #tpu.memory_space<vmem>>, vector<1x8x128xf32>
    tpu.vector_store %arg6[%c0_19, %c0_20, %c0_21], %38 {strides = array<i32>} : memref<1x8x128xf32, #tpu.memory_space<vmem>>, vector<1x8x128xf32>,
    return
  }
  func.func @transform_0(%arg0: i32) -> (i32, i32, i32) {
    %c0_i32 = arith.constant 0 : i32
    %c0_i32_0 = arith.constant 0 : i32
    %c0_i32_1 = arith.constant 0 : i32
    return %arg0, %c0_i32, %c0_i32_0 : i32, i32, i32
  }
  func.func @transform_1(%arg0: i32) -> (i32, i32) {
    %c0_i32 = arith.constant 0 : i32
    %c0_i32_0 = arith.constant 0 : i32
    %c0_i32_1 = arith.constant 0 : i32
    return %c0_i32, %c0_i32_0 : i32, i32
  }
  func.func @transform_2(%arg0: i32) -> (i32, i32) {
    %c0_i32 = arith.constant 0 : i32
    %c0_i32_0 = arith.constant 0 : i32
    %c0_i32_1 = arith.constant 0 : i32
    return %c0_i32, %c0_i32_0 : i32, i32
  }
  func.func @transform_3(%arg0: i32) -> (i32, i32) {
    %c0_i32 = arith.constant 0 : i32
    %c0_i32_0 = arith.constant 0 : i32
    %c0_i32_1 = arith.constant 0 : i32
    return %c0_i32, %c0_i32_0 : i32, i32
  }
  func.func @transform_4(%arg0: i32) -> (i32, i32) {
    %c0_i32 = arith.constant 0 : i32
    %c0_i32_0 = arith.constant 0 : i32
    %c0_i32_1 = arith.constant 0 : i32
    return %c0_i32, %c0_i32_0 : i32, i32
  }
  func.func @transform_5(%arg0: i32) -> (i32, i32, i32) {
    %c0_i32 = arith.constant 0 : i32
    %c0_i32_0 = arith.constant 0 : i32
    %c0_i32_1 = arith.constant 0 : i32
    return %arg0, %c0_i32, %c0_i32_0 : i32, i32, i32
  }
}

</mosaic_0001>

<llo_original>
// kernel: tpu_custom_call.1
$region0: #{tpu_custom_call.1}
  #allocation0 [shape = 'u32[]', space=smem, size = 0x4, offset = 0x4, fixed_abs, tag = 'smem constant byte address 0x4 - core index']
  #allocation1 [shape = 'u32[144,128]{1,0:T(1,128)}', space=vmem, size = 0x12000, scoped, tag = 'internal scratch']
  %s0 = inlined_call_operand.vmem [shape: f32[2,8,16], index: 0, kind: input, shape index: {}]
  %s1 = inlined_call_operand.vmem [shape: f32[32,8], index: 1, kind: input, shape index: {}]
  %s2 = inlined_call_operand.vmem [shape: f32[32,1], index: 2, kind: input, shape index: {}]
  %s3 = inlined_call_operand.vmem [shape: f32[16,24], index: 3, kind: input, shape index: {}]
  %s4 = inlined_call_operand.vmem [shape: f32[1,24], index: 4, kind: input, shape index: {}]
  %s5 = inlined_call_operand.hbm [shape: f32[2,8,128], index: 5, kind: output, shape index: {}]
  %s6 = sld [smem:[#allocation0]]
  $region53: #{tpu_custom_call.1} parent=0
    _
  %s8 = ssub.s32 1, %s6
  %s9 = scalar_select 0, %s8, %s6
  $region1: #{tpu_custom_call.1} parent=0
    #allocation2 [shape = 'u8[8192]{0}', space=vmem, size = 0x2000, scoped, tag = 'output window, operand 0']
    #allocation3 [shape = 's32[2]{0}', space=sflag, size = 0x8, scoped, tag = 'scoped memory for tpu_custom_call.1']
    %10 = vsyncpa [#allocation3], 0
    %s11 = scalar_lea.sflag [#allocation3], 1
    %12 = vsyncpa %s11, 0
    loop: start=0, step=1, limit=4
    $region2: #{tpu_custom_call.1} parent=1 // loop_pre_header
      _
    $region3: #{tpu_custom_call.1} parent=1 // loop_header
      %s14 = sphi 0, %s18
      %p15 = scmp.ge.s32.totalorder %s14, 4
      %s24 = sphi 0, %s26
      %s27 = sphi 0, %s24
      %s28 = sphi 0, %s27
      %s44 = sphi 0, %s28
      %s48 = sphi 0, %s48
      %s50 = sphi 0, %s48
      %s51 = sphi 0, %s50
      %s65 = sphi 0, %s51
      %s69 = sphi 0, %s69
      %s71 = sphi 0, %s69
      %s72 = sphi 0, %s71
      %s86 = sphi 0, %s72
      %s90 = sphi 0, %s90
      %s92 = sphi 0, %s90
      %s93 = sphi 0, %s92
      %s107 = sphi 0, %s93
      %s111 = sphi 0, %s111
      %s113 = sphi 0, %s111
      %s114 = sphi 0, %s113
      %s128 = sphi 0, %s114
      %s134 = sphi 0, %s136
      %s137 = sphi 0, %s134
      %s138 = sphi 0, %s137
      %s154 = sphi 0, %s138
    $region4: #{tpu_custom_call.1} parent=1 // loop_header_branch
      %17 = sbr.rel (%p15) target = $region8
    $region5: #{tpu_custom_call.1} parent=1 // loop_body
      %s19 = ssub.s32 %s14, 1
      %s20 = ssub.s32 %s14, 2
      %s21 = sadd.s32 %s14, 1
      %s22 = ssub.s32 %s14, %s21
      %p23 = scmp.eq.s32.totalorder %s22, 0
      %s25 = sadd.s32 %s24, 1
      %s26 = scalar_select %p23, %s24, %s25
      %p29 = pneg %p23
      %p30 = scmp.eq.s32.totalorder %s14, 1
      %p31 = por %p29, %p30
      %p32 = scmp.ne.s32.totalorder %s24, %s27
      %p33 = scmp.eq.s32.totalorder %s14, 0
      %p34 = por %p32, %p33
      %p35 = scmp.ne.s32.totalorder %s24, %s27
      %p36 = scmp.eq.s32.totalorder %s19, 1
      %p37 = por %p35, %p36
      %p38 = scmp.ne.s32.totalorder %s27, %s28
      %p39 = scmp.eq.s32.totalorder %s19, 0
      %p40 = por %p38, %p39
      %p41 = scmp.ne.s32.totalorder %s27, %s28
      %p42 = scmp.eq.s32.totalorder %s20, 1
      %p43 = por %p41, %p42
      %p45 = scmp.ne.s32.totalorder %s28, %s44
      %p46 = scmp.eq.s32.totalorder %s20, 0
      %p47 = por %p45, %p46
      %s49 = sadd.s32 %s48, 1
      %p52 = scmp.eq.s32.totalorder %s14, 1
      %p53 = scmp.ne.s32.totalorder %s48, %s50
      %p54 = scmp.eq.s32.totalorder %s14, 0
      %p55 = por %p53, %p54
      %p56 = scmp.ne.s32.totalorder %s48, %s50
      %p57 = scmp.eq.s32.totalorder %s19, 1
      %p58 = por %p56, %p57
      %p59 = scmp.ne.s32.totalorder %s50, %s51
      %p60 = scmp.eq.s32.totalorder %s19, 0
      %p61 = por %p59, %p60
      %p62 = scmp.ne.s32.totalorder %s50, %s51
      %p63 = scmp.eq.s32.totalorder %s20, 1
      %p64 = por %p62, %p63
      %p66 = scmp.ne.s32.totalorder %s51, %s65
      %p67 = scmp.eq.s32.totalorder %s20, 0
      %p68 = por %p66, %p67
      %s70 = sadd.s32 %s69, 1
      %p73 = scmp.eq.s32.totalorder %s14, 1
      %p74 = scmp.ne.s32.totalorder %s69, %s71
      %p75 = scmp.eq.s32.totalorder %s14, 0
      %p76 = por %p74, %p75
      %p77 = scmp.ne.s32.totalorder %s69, %s71
      %p78 = scmp.eq.s32.totalorder %s19, 1
      %p79 = por %p77, %p78
      %p80 = scmp.ne.s32.totalorder %s71, %s72
      %p81 = scmp.eq.s32.totalorder %s19, 0
      %p82 = por %p80, %p81
      %p83 = scmp.ne.s32.totalorder %s71, %s72
      %p84 = scmp.eq.s32.totalorder %s20, 1
      %p85 = por %p83, %p84
      %p87 = scmp.ne.s32.totalorder %s72, %s86
      %p88 = scmp.eq.s32.totalorder %s20, 0
      %p89 = por %p87, %p88
      %s91 = sadd.s32 %s90, 1
      %p94 = scmp.eq.s32.totalorder %s14, 1
      %p95 = scmp.ne.s32.totalorder %s90, %s92
      %p96 = scmp.eq.s32.totalorder %s14, 0
      %p97 = por %p95, %p96
      %p98 = scmp.ne.s32.totalorder %s90, %s92
      %p99 = scmp.eq.s32.totalorder %s19, 1
      %p100 = por %p98, %p99
      %p101 = scmp.ne.s32.totalorder %s92, %s93
      %p102 = scmp.eq.s32.totalorder %s19, 0
      %p103 = por %p101, %p102
      %p104 = scmp.ne.s32.totalorder %s92, %s93
      %p105 = scmp.eq.s32.totalorder %s20, 1
      %p106 = por %p104, %p105
      %p108 = scmp.ne.s32.totalorder %s93, %s107
      %p109 = scmp.eq.s32.totalorder %s20, 0
      %p110 = por %p108, %p109
      %s112 = sadd.s32 %s111, 1
      %p115 = scmp.eq.s32.totalorder %s14, 1
      %p116 = scmp.ne.s32.totalorder %s111, %s113
      %p117 = scmp.eq.s32.totalorder %s14, 0
      %p118 = por %p116, %p117
      %p119 = scmp.ne.s32.totalorder %s111, %s113
      %p120 = scmp.eq.s32.totalorder %s19, 1
      %p121 = por %p119, %p120
      %p122 = scmp.ne.s32.totalorder %s113, %s114
      %p123 = scmp.eq.s32.totalorder %s19, 0
      %p124 = por %p122, %p123
      %p125 = scmp.ne.s32.totalorder %s113, %s114
      %p126 = scmp.eq.s32.totalorder %s20, 1
      %p127 = por %p125, %p126
      %p129 = scmp.ne.s32.totalorder %s114, %s128
      %p130 = scmp.eq.s32.totalorder %s20, 0
      %p131 = por %p129, %p130
      %s132 = ssub.s32 %s14, %s21
      %p133 = scmp.eq.s32.totalorder %s132, 0
      %s135 = sadd.s32 %s134, 1
      %s136 = scalar_select %p133, %s134, %s135
      %p139 = pneg %p133
      %p140 = scmp.eq.s32.totalorder %s14, 1
      %p141 = por %p139, %p140
      %p142 = scmp.ne.s32.totalorder %s134, %s137
      %p143 = scmp.eq.s32.totalorder %s14, 0
      %p144 = por %p142, %p143
      %p145 = scmp.ne.s32.totalorder %s134, %s137
      %p146 = scmp.eq.s32.totalorder %s19, 1
      %p147 = por %p145, %p146
      %p148 = scmp.ne.s32.totalorder %s137, %s138
      %p149 = scmp.eq.s32.totalorder %s19, 0
      %p150 = por %p148, %p149
      %p151 = scmp.ne.s32.totalorder %s137, %s138
      %p152 = scmp.eq.s32.totalorder %s20, 1
      %p153 = por %p151, %p152
      %p155 = scmp.ne.s32.totalorder %s138, %s154
      %p156 = scmp.eq.s32.totalorder %s20, 0
      %p157 = por %p155, %p156
      %p158 = scmp.le.s32.totalorder 1, %s14
      %p159 = scmp.lt.s32.totalorder %s14, 3
      %p160 = pnand %p158, %p159
      %p161 = pneg %p160
      // Predicated region
      $region9: #{tpu_custom_call.1} parent=5 // pred_check
        _
      $region10: #{tpu_custom_call.1} parent=5 // pred_check_branch
        %163 = sbr.rel (%p160) target = $region12
      $region11: #{tpu_custom_call.1} parent=5 // pred_region
        %s164 = ssub.s32 %s14, 1
        // Predicated region
        $region13: #{tpu_custom_call.1} parent=11 // pred_check
          %p165 = pneg %p61
        $region14: #{tpu_custom_call.1} parent=11 // pred_check_branch
          %167 = sbr.rel (%p165) target = $region16
        $region15: #{tpu_custom_call.1} parent=11 // pred_region
          _
        $region16: #{tpu_custom_call.1} parent=11 // pred_fallthru
          _
        // Predicated region
        $region17: #{tpu_custom_call.1} parent=11 // pred_check
          %p168 = pneg %p82
        $region18: #{tpu_custom_call.1} parent=11 // pred_check_branch
          %170 = sbr.rel (%p168) target = $region20
        $region19: #{tpu_custom_call.1} parent=11 // pred_region
          _
        $region20: #{tpu_custom_call.1} parent=11 // pred_fallthru
          _
        // Predicated region
        $region21: #{tpu_custom_call.1} parent=11 // pred_check
          %p171 = pneg %p103
        $region22: #{tpu_custom_call.1} parent=11 // pred_check_branch
          %173 = sbr.rel (%p171) target = $region24
        $region23: #{tpu_custom_call.1} parent=11 // pred_region
          _
        $region24: #{tpu_custom_call.1} parent=11 // pred_fallthru
          _
        // Predicated region
        $region25: #{tpu_custom_call.1} parent=11 // pred_check
          %p174 = pneg %p124
        $region26: #{tpu_custom_call.1} parent=11 // pred_check_branch
          %176 = sbr.rel (%p174) target = $region28
        $region27: #{tpu_custom_call.1} parent=11 // pred_region
          _
        $region28: #{tpu_custom_call.1} parent=11 // pred_fallthru
          _
      $region12: #{tpu_custom_call.1} parent=5 // pred_fallthru
        _
      %p177 = scmp.lt.s32.totalorder %s14, 2
      // Predicated region
      $region29: #{tpu_custom_call.1} parent=5 // pred_check
        %p178 = pneg %p177
      $region30: #{tpu_custom_call.1} parent=5 // pred_check_branch
        %180 = sbr.rel (%p178) target = $region32
      $region31: #{tpu_custom_call.1} parent=5 // pred_region
        // Predicated region
        $region33: #{tpu_custom_call.1} parent=31 // pred_check
          %p181 = pneg %p34
        $region34: #{tpu_custom_call.1} parent=31 // pred_check_branch
          %183 = sbr.rel (%p181) target = $region36
        $region35: #{tpu_custom_call.1} parent=31 // pred_region
          %p184 = scmp.lt.s32.totalorder %s14, 1
          %s185 = scalar_select %p184, %s14, 1
          %s186 = smul.addr %s185, 8
          %s187 = scalar_lea.vmem %s0, %s186
        $region36: #{tpu_custom_call.1} parent=31 // pred_fallthru
          _
      $region32: #{tpu_custom_call.1} parent=5 // pred_fallthru
        _
      %p188 = scmp.le.s32.totalorder 1, %s14
      %p189 = scmp.lt.s32.totalorder %s14, 3
      %p190 = pnand %p188, %p189
      %p191 = pneg %p190
      // Predicated region
      $region37: #{tpu_custom_call.1} parent=5 // pred_check
        _
      $region38: #{tpu_custom_call.1} parent=5 // pred_check_branch
        %193 = sbr.rel (%p190) target = $region40
      $region39: #{tpu_custom_call.1} parent=5 // pred_region
        %s194 = ssub.s32 %s14, 1
        %p195 = scmp.lt.s32.totalorder %s19, 1
        %s196 = scalar_select %p195, %s19, 1
        %s197 = smul.addr %s196, 8
        %s198 = scalar_lea.vmem %s0, %s197
        %p199 = pneg %p40
        %p200 = pneg %p37
        %p201 = pneg %p61
        %p202 = pneg %p58
        %p203 = pneg %p82
        %p204 = pneg %p79
        %p205 = pneg %p103
        %p206 = pneg %p100
        %p207 = pneg %p124
        %p208 = pneg %p121
        %p209 = pneg %p150
        %p210 = pneg %p147
        %s211 = sand.u32 %s137, 1
        %s212 = scalar_lea.sflag [#allocation3], %s211
        %s213 = sand.u32 %s137, 1
        %s214 = smul.addr %s213, 8
        %s215 = scalar_lea.vmem [#allocation2], %s214
        %p216 = scmp.lt.s32.totalorder %s19, 1
        %s217 = scalar_select %p216, %s19, 1
        %s218 = smul.addr %s217, 8
        %s219 = scalar_lea.vmem %s0, %s218
        %v220 = vld [vmem:[%s219] sm:$0xff]
        %v221 = vld [vmem:[%s1] sm:$0xff]
        %v222 = vld [vmem:[%s1 + $0x8] sm:$0xff]
        %v223 = vld [vmem:[%s1 + $0x10] sm:$0xff]
        %v224 = vld [vmem:[%s1 + $0x18] sm:$0xff]
        %v225 = vld [vmem:[%s2] sm:$0xff]
        %v226 = vld [vmem:[%s2 + $0x8] sm:$0xff]
        %v227 = vld [vmem:[%s2 + $0x10] sm:$0xff]
        %v228 = vld [vmem:[%s2 + $0x18] sm:$0xff]
        %230 = vset.pattern.permute.xlu0 0
        %231 = vperm.xlu0 %230, %v225
        %v232 = vpop.permute.xlu0 %231
        %235 = vset.pattern.permute.xlu0 0
        %236 = vperm.xlu0 %235, %v226
        %v237 = vpop.permute.xlu0 %236
        %240 = vset.pattern.permute.xlu0 0
        %241 = vperm.xlu0 %240, %v227
        %v242 = vpop.permute.xlu0 %241
        %245 = vset.pattern.permute.xlu0 0
        %246 = vperm.xlu0 %245, %v228
        %v247 = vpop.permute.xlu0 %246
        %vm249 = vcmask 64512
        %v251 = vsel %vm249, %v221, 0
        %v254 = vsel %vm249, %v222, 0
        %v257 = vsel %vm249, %v223, 0
        %v260 = vsel %vm249, %v224, 0
        %262 = vmatprep.subr.mxu0 0.0
        %263 = vmatpush1.msra.mxu0 %v220
        %264 = vmatprep.subr.mxu0 0.0
        %265 = vmatpush1.msra.mxu0 0.0
        %266 = vmatprep.subr.mxu0 0.0
        %267 = vmatpush1.msra.mxu0 0.0
        %268 = vmatprep.subr.mxu0 0.0
        %269 = vmatpush1.msra.mxu0 0.0
        %270 = vmatprep.subr.mxu0 0.0
        %271 = vmatpush1.msra.mxu0 0.0
        %272 = vmatprep.subr.mxu0 0.0
        %273 = vmatpush1.msra.mxu0 0.0
        %274 = vmatprep.subr.mxu0 0.0
        %275 = vmatpush1.msra.mxu0 0.0
        %276 = vmatprep.subr.mxu0 0.0
        %277 = vmatpush1.msra.mxu0 0.0
        %278 = vmatprep.subr.mxu0 0.0
        %279 = vmatpush1.msra.mxu0 0.0
        %280 = vmatprep.subr.mxu0 0.0
        %281 = vmatpush1.msra.mxu0 0.0
        %282 = vmatprep.subr.mxu0 0.0
        %283 = vmatpush1.msra.mxu0 0.0
        %284 = vmatprep.subr.mxu0 0.0
        %285 = vmatpush1.msra.mxu0 0.0
        %286 = vmatprep.subr.mxu0 0.0
        %287 = vmatpush1.msra.mxu0 0.0
        %288 = vmatprep.subr.mxu0 0.0
        %289 = vmatpush1.msra.mxu0 0.0
        %290 = vmatprep.subr.mxu0 0.0
        %291 = vmatpush1.msra.mxu0 0.0
        %292 = vmatprep.subr.mxu0 0.0
        %293 = vmatpush1.msra.mxu0 0.0
        %294 = vmatprep.subr.mxu0 0.0
        %295 = vmatpush1.msra.mxu0 0.0
        %296 = vmatprep.subr.mxu0 0.0
        %297 = vmatpush1.msra.mxu0 0.0
        %298 = vmatprep.subr.mxu0 0.0
        %299 = vmatpush1.msra.mxu0 0.0
        %300 = vmatprep.subr.mxu0 0.0
        %301 = vmatpush1.msra.mxu0 0.0
        %302 = vmatprep.subr.mxu0 0.0
        %303 = vmatpush1.msra.mxu0 0.0
        %304 = vmatprep.subr.mxu0 0.0
        %305 = vmatpush1.msra.mxu0 0.0
        %306 = vmatprep.subr.mxu0 0.0
        %307 = vmatpush1.msra.mxu0 0.0
        %308 = vmatprep.subr.mxu0 0.0
        %309 = vmatpush1.msra.mxu0 0.0
        %310 = vmatprep.subr.mxu0 0.0
        %311 = vmatpush1.msra.mxu0 0.0
        %312 = vmatprep.subr.mxu0 0.0
        %313 = vmatpush1.msra.mxu0 0.0
        %314 = vmatprep.subr.mxu0 0.0
        %315 = vmatpush1.msra.mxu0 0.0
        %316 = vmatprep.subr.mxu0 0.0
        %317 = vmatpush1.msra.mxu0 0.0
        %318 = vmatprep.subr.mxu0 0.0
        %319 = vmatpush1.msra.mxu0 0.0
        %320 = vmatprep.subr.mxu0 0.0
        %321 = vmatpush1.msra.mxu0 0.0
        %322 = vmatprep.subr.mxu0 0.0
        %323 = vmatpush1.msra.mxu0 0.0
        %324 = vmatprep.subr.mxu0 0.0
        %325 = vmatpush1.msra.mxu0 0.0
        %326 = vmatprep.mubr.f32.mxu0 0.0
        %327 = vmatmul.mubr.f32.gmra.mrb[0].mxu0 %v251
        %v328 = vpop.f32.mrb[0].mxu0
        %v329 = vadd.f32 %v232, %v328
        %v330 = vpop.f32.mrb[0].mxu0
        %331 = vmatprep.mubr.f32.mxu0 0.0
        %332 = vmatmul.mubr.f32.gmra.mrb[0].mxu0 %v254
        %v333 = vpop.f32.mrb[0].mxu0
        %v334 = vadd.f32 %v237, %v333
        %v335 = vpop.f32.mrb[0].mxu0
        %336 = vmatprep.mubr.f32.mxu0 0.0
        %337 = vmatmul.mubr.f32.gmra.mrb[0].mxu0 %v257
        %v338 = vpop.f32.mrb[0].mxu0
        %v339 = vadd.f32 %v242, %v338
        %v340 = vpop.f32.mrb[0].mxu0
        %341 = vmatprep.mubr.f32.mxu0 0.0
        %342 = vmatmul.mubr.f32.gmra.mrb[0].mxu0 %v260
        %v343 = vpop.f32.mrb[0].mxu0
        %v344 = vadd.f32 %v247, %v343
        %v345 = vpop.f32.mrb[0].mxu0
        %346 = vdwg.mxu0
        %vm347 = vcmask 130048
        %v348 = vsel %vm347, %v329, -inf
        %v349 = vsel %vm347, %v334, -inf
        %v350 = vsel %vm347, %v339, -inf
        %v351 = vsel %vm347, %v344, -inf
        %v352 = vmax.f32 %v348, %v349
        %v353 = vmax.f32 %v350, %v351
        %v354 = vmax.f32 %v352, %v353
        %v355 = vrot.slane %v354, 4
        %v356 = vmax.f32 %v354, %v355
        %v357 = vrot.slane %v356, 2
        %v358 = vmax.f32 %v356, %v357
        %v359 = vrot.slane %v358, 1
        %v360 = vmax.f32 %v358, %v359
        %v361 = vlaneseq
        %v362 = vshrl.u32 %v361, 7
        %v363 = vadd.s32 %v362, 8
        %v364 = vadd.s32 %v362, 16
        %v365 = vadd.s32 %v362, 24
        %vm366 = vcmp.eq.f32.partialorder %v329, %v360
        %vm367 = vcmp.eq.f32.partialorder %v334, %v360
        %vm368 = vcmp.eq.f32.partialorder %v339, %v360
        %vm369 = vcmp.eq.f32.partialorder %v344, %v360
        %v370 = vsel %vm366, %v362, 32
        %v371 = vsel %vm367, %v363, 32
        %v372 = vsel %vm368, %v364, 32
        %v373 = vsel %vm369, %v365, 32
        %v374 = vsel %vm347, %v370, 2147483647
        %v375 = vsel %vm347, %v371, 2147483647
        %v376 = vsel %vm347, %v372, 2147483647
        %v377 = vsel %vm347, %v373, 2147483647
        %vm378 = vcmp.lt.s32.totalorder %v374, %v375
        %v379 = vsel %vm378, %v374, %v375
        %vm380 = vcmp.lt.s32.totalorder %v376, %v377
        %v381 = vsel %vm380, %v376, %v377
        %vm382 = vcmp.lt.s32.totalorder %v379, %v381
        %v383 = vsel %vm382, %v379, %v381
        %v384 = vrot.slane %v383, 4
        %vm385 = vcmp.lt.s32.totalorder %v383, %v384
        %v386 = vsel %vm385, %v383, %v384
        %v387 = vrot.slane %v386, 2
        %vm388 = vcmp.lt.s32.totalorder %v386, %v387
        %v389 = vsel %vm388, %v386, %v387
        %v390 = vrot.slane %v389, 1
        %vm391 = vcmp.lt.s32.totalorder %v389, %v390
        %v392 = vsel %vm391, %v389, %v390
        %v393 = vcvt.s32.f32 %v392
        %v394 = vadd.f32 %v329, %v393
        %v395 = vadd.f32 %v334, %v393
        %v396 = vadd.f32 %v339, %v393
        %v397 = vadd.f32 %v344, %v393
        %v398 = vld [vmem:[%s3] sm:$0xff]
        %v399 = vld [vmem:[%s3 + $0x8] sm:$0xff]
        %v400 = vmax.f32 %v398, 0.0
        %v401 = vmax.f32 %v399, 0.0
        %v402 = vld [vmem:[%s4] sm:$0x1]
        %v403 = vmax.f32 %v402, 0.0
        %v405 = vlaneseq
        %v406 = vshrl.u32 %v405, 7
        %v407 = vsub.s32 0, %v406
        %v408 = vrot.slane %v403, %v407
        %v411 = vsel %vm347, %v394, 0
        %v414 = vsel %vm347, %v395, 0
        %v417 = vsel %vm347, %v396, 0
        %v420 = vsel %vm347, %v397, 0
        %422 = vmatprep.subr.mxu0 0.0
        %423 = vmatpush1.msra.mxu0 %v400
        %424 = vmatprep.subr.mxu0 0.0
        %425 = vmatpush1.msra.mxu0 %v401
        %426 = vmatprep.subr.mxu0 0.0
        %427 = vmatpush1.msra.mxu0 0.0
        %428 = vmatprep.subr.mxu0 0.0
        %429 = vmatpush1.msra.mxu0 0.0
        %430 = vmatprep.subr.mxu0 0.0
        %431 = vmatpush1.msra.mxu0 0.0
        %432 = vmatprep.subr.mxu0 0.0
        %433 = vmatpush1.msra.mxu0 0.0
        %434 = vmatprep.subr.mxu0 0.0
        %435 = vmatpush1.msra.mxu0 0.0
        %436 = vmatprep.subr.mxu0 0.0
        %437 = vmatpush1.msra.mxu0 0.0
        %438 = vmatprep.subr.mxu0 0.0
        %439 = vmatpush1.msra.mxu0 0.0
        %440 = vmatprep.subr.mxu0 0.0
        %441 = vmatpush1.msra.mxu0 0.0
        %442 = vmatprep.subr.mxu0 0.0
        %443 = vmatpush1.msra.mxu0 0.0
        %444 = vmatprep.subr.mxu0 0.0
        %445 = vmatpush1.msra.mxu0 0.0
        %446 = vmatprep.subr.mxu0 0.0
        %447 = vmatpush1.msra.mxu0 0.0
        %448 = vmatprep.subr.mxu0 0.0
        %449 = vmatpush1.msra.mxu0 0.0
        %450 = vmatprep.subr.mxu0 0.0
        %451 = vmatpush1.msra.mxu0 0.0
        %452 = vmatprep.subr.mxu0 0.0
        %453 = vmatpush1.msra.mxu0 0.0
        %454 = vmatprep.subr.mxu0 0.0
        %455 = vmatpush1.msra.mxu0 0.0
        %456 = vmatprep.subr.mxu0 0.0
        %457 = vmatpush1.msra.mxu0 0.0
        %458 = vmatprep.subr.mxu0 0.0
        %459 = vmatpush1.msra.mxu0 0.0
        %460 = vmatprep.subr.mxu0 0.0
        %461 = vmatpush1.msra.mxu0 0.0
        %462 = vmatprep.subr.mxu0 0.0
        %463 = vmatpush1.msra.mxu0 0.0
        %464 = vmatprep.subr.mxu0 0.0
        %465 = vmatpush1.msra.mxu0 0.0
        %466 = vmatprep.subr.mxu0 0.0
        %467 = vmatpush1.msra.mxu0 0.0
        %468 = vmatprep.subr.mxu0 0.0
        %469 = vmatpush1.msra.mxu0 0.0
        %470 = vmatprep.subr.mxu0 0.0
        %471 = vmatpush1.msra.mxu0 0.0
        %472 = vmatprep.subr.mxu0 0.0
        %473 = vmatpush1.msra.mxu0 0.0
        %474 = vmatprep.subr.mxu0 0.0
        %475 = vmatpush1.msra.mxu0 0.0
        %476 = vmatprep.subr.mxu0 0.0
        %477 = vmatpush1.msra.mxu0 0.0
        %478 = vmatprep.subr.mxu0 0.0
        %479 = vmatpush1.msra.mxu0 0.0
        %480 = vmatprep.subr.mxu0 0.0
        %481 = vmatpush1.msra.mxu0 0.0
        %482 = vmatprep.subr.mxu0 0.0
        %483 = vmatpush1.msra.mxu0 0.0
        %484 = vmatprep.subr.mxu0 0.0
        %485 = vmatpush1.msra.mxu0 0.0
        %486 = vmatprep.mubr.f32.mxu0 0.0
        %487 = vmatmul.mubr.f32.gmra.mrb[0].mxu0 %v411
        %v488 = vpop.f32.mrb[0].mxu0
        %v489 = vadd.f32 %v408, %v488
        %v490 = vpop.f32.mrb[0].mxu0
        %491 = vmatprep.mubr.f32.mxu0 0.0
        %492 = vmatmul.mubr.f32.gmra.mrb[0].mxu0 %v414
        %v493 = vpop.f32.mrb[0].mxu0
        %v494 = vadd.f32 %v408, %v493
        %v495 = vpop.f32.mrb[0].mxu0
        %496 = vmatprep.mubr.f32.mxu0 0.0
        %497 = vmatmul.mubr.f32.gmra.mrb[0].mxu0 %v417
        %v498 = vpop.f32.mrb[0].mxu0
        %v499 = vadd.f32 %v408, %v498
        %v500 = vpop.f32.mrb[0].mxu0
        %501 = vmatprep.mubr.f32.mxu0 0.0
        %502 = vmatmul.mubr.f32.gmra.mrb[0].mxu0 %v420
        %v503 = vpop.f32.mrb[0].mxu0
        %v504 = vadd.f32 %v408, %v503
        %v505 = vpop.f32.mrb[0].mxu0
        %506 = vdwg.mxu0
        %v507 = vmax.f32 %v489, -1.0
        %v508 = vmax.f32 %v494, -1.0
        %v509 = vmax.f32 %v499, -1.0
        %v510 = vmax.f32 %v504, -1.0
        %v511 = vmin.f32 %v507, 1.0
        %v512 = vmin.f32 %v508, 1.0
        %v513 = vmin.f32 %v509, 1.0
        %v514 = vmin.f32 %v510, 1.0
        %vm515 = vcmask 195584
        %v516 = vsel %vm515, %v511, 0.0
        %517 = vadd.xlane.f32.xlu0 %v516
        %v518 = vpop.xlane.xlu0 %517
        %v519 = vsel %vm515, %v512, 0.0
        %520 = vadd.xlane.f32.xlu0 %v519
        %v521 = vpop.xlane.xlu0 %520
        %v522 = vsel %vm515, %v513, 0.0
        %523 = vadd.xlane.f32.xlu0 %v522
        %v524 = vpop.xlane.xlu0 %523
        %v525 = vsel %vm515, %v514, 0.0
        %526 = vadd.xlane.f32.xlu0 %v525
        %v527 = vpop.xlane.xlu0 %526
        %v528 = vadd.f32 %v518, %v521
        %v529 = vadd.f32 %v528, %v524
        %v530 = vadd.f32 %v529, %v527
        %v531 = vrot.slane %v530, 4
        %v532 = vadd.f32 %v530, %v531
        %v533 = vrot.slane %v532, 2
        %v534 = vadd.f32 %v532, %v533
        %v535 = vrot.slane %v534, 1
        %v536 = vadd.f32 %v534, %v535
        %537 = vst [vmem:[%s215] sm:$0xff] %v536
        %s538 = sand.u32 %s137, 1
        %s539 = scalar_lea.sflag [#allocation3], %s538
        %s540 = sand.u32 %s137, 1
        %s541 = smul.addr %s540, 8
        %s542 = scalar_lea.vmem [#allocation2], %s541
        // Predicated region
        $region41: #{tpu_custom_call.1} parent=39 // pred_check
          %p543 = pneg %p147
        $region42: #{tpu_custom_call.1} parent=39 // pred_check_branch
          %545 = sbr.rel (%p543) target = $region44
        $region43: #{tpu_custom_call.1} parent=39 // pred_region
          %s547 = ssub.s32 128, 128
          %548 = vsyncadd %s539, %s547
          %s549 = smul.addr %s19, 128
          %s550 = scalar_lea.hbm %s5, %s549
          %s552 = sshll.u32 %s542, 4
          %s553 = int_to_ptr.vmem [resolvable:$true] %s552
          %555 = dma.vmem_to_hbm [thread:$0]  %s553, 128, %s550, %s539
        $region44: #{tpu_custom_call.1} parent=39 // pred_fallthru
          _
      $region40: #{tpu_custom_call.1} parent=5 // pred_fallthru
        _
      %p556 = scmp.le.s32.totalorder 2, %s14
      // Predicated region
      $region45: #{tpu_custom_call.1} parent=5 // pred_check
        %p557 = pneg %p556
      $region46: #{tpu_custom_call.1} parent=5 // pred_check_branch
        %559 = sbr.rel (%p557) target = $region48
      $region47: #{tpu_custom_call.1} parent=5 // pred_region
        %s560 = ssub.s32 %s14, 2
        // Predicated region
        $region49: #{tpu_custom_call.1} parent=47 // pred_check
          %p561 = pneg %p153
        $region50: #{tpu_custom_call.1} parent=47 // pred_check_branch
          %563 = sbr.rel (%p561) target = $region52
        $region51: #{tpu_custom_call.1} parent=47 // pred_region
          %s564 = sand.u32 %s138, 1
          %s565 = scalar_lea.sflag [#allocation3], %s564
          %s566 = sand.u32 %s138, 1
          %s567 = smul.addr %s566, 8
          %s568 = scalar_lea.vmem [#allocation2], %s567
          %569 = dma.done %s565, 128
        $region52: #{tpu_custom_call.1} parent=47 // pred_fallthru
          _
      $region48: #{tpu_custom_call.1} parent=5 // pred_fallthru
        _
    $region6: #{tpu_custom_call.1} parent=1 // loop_footer
      %s18 = sadd.s32 1, %s14
    $region7: #{tpu_custom_call.1} parent=1 // loop_footer_branch
      %13 = sbr.rel target = $region3
    $region8: #{tpu_custom_call.1} parent=1 // loop_exit
      _
    %570 = vsyncpa [#allocation3], 1
    %s571 = scalar_lea.sflag [#allocation3], 1
    %572 = vsyncpa %s571, 1

</llo_original>
